<compile_context>
chip_gen: v5e
topology: v5e:2x2
jax: 0.10.0
libtpu: 0.0.40
codegen_flags: <defaults>
</compile_context>

<pallas_src>
import functools

import jax
import jax.numpy as jnp
from jax.experimental import pallas as pl
from jax.experimental.pallas import tpu as pltpu


_LANE = 128
_SUBLANE = 8
_FUSED_BLOCK_BYTES = 4 * 1024 * 1024       # per x slab, counted in f32
_TWO_PHASE_BLOCK_BYTES = 2 * 1024 * 1024   # per x tile in the fallback path
_VMEM_LIMIT_BYTES = 48 * 1024 * 1024       # headroom below v7x's 64 MiB physical


def _divisor_tiles(total, align):
    """Divisors of `total` that are multiples of `align` (plus `total` itself), descending."""
    tiles = {total}
    if total % align == 0:
        for t in range(align, total, align):
            if total % t == 0:
                tiles.add(t)
    return sorted(tiles, reverse=True)


# ---------------------------------------------------------------------------
# Fused single-pass kernel: stats + normalize + conditional affine per slab.
# ---------------------------------------------------------------------------
def _fused_kernel(x_ref, gain_ref, bias_ref, o_ref, *, inv_count, eps):
    # x_ref: (N, c_tile, HW_pad) VMEM-resident slab; gain/bias: (N, c_tile, 1).
    x = x_ref[...].astype(jnp.float32)
    # Per-channel sum / sum-of-squares over N and HW (padded zeros contribute 0).
    ssum = jnp.sum(jnp.sum(x, axis=2, keepdims=True), axis=0, keepdims=True)
    ssq = jnp.sum(jnp.sum(x * x, axis=2, keepdims=True), axis=0, keepdims=True)
    mean = ssum * inv_count                                   # (1, c_tile, 1)
    # TODO(synk): E[x^2]-mean^2 can lose precision when |mean| >> std; a
    # shifted/Welford accumulation would be safer for large-offset activations.
    var = jnp.maximum(ssq * inv_count - mean * mean, 0.0)
    inv_std = jax.lax.rsqrt(var + eps)                        # EUP, per channel
    scale = inv_std * gain_ref[...]                           # (N, c_tile, 1)
    shift = bias_ref[...] - mean * scale
    o_ref[...] = (x * scale + shift).astype(o_ref.dtype)      # one FMA / element


# ---------------------------------------------------------------------------
# Two-phase fallback kernels (slab does not fit VMEM).
# ---------------------------------------------------------------------------
def _stats_kernel(x_ref, ssum_ref, ssq_ref):
    # x_ref: (1, c_tile, hw_tile); ssum/ssq: (c_tile, 1) VMEM-resident
    # accumulators (block index constant along the N / HW reduction axes).
    n = pl.program_id(1)
    h = pl.program_id(2)

    @pl.when((n == 0) & (h == 0))
    def _():
        ssum_ref[...] = jnp.zeros_like(ssum_ref)
        ssq_ref[...] = jnp.zeros_like(ssq_ref)

    x = x_ref[0].astype(jnp.float32)                    # (c_tile, hw_tile)
    ssum_ref[...] += jnp.sum(x, axis=1, keepdims=True)  # cross-lane reduce (XLU)
    ssq_ref[...] += jnp.sum(x * x, axis=1, keepdims=True)


def _norm_kernel(x_ref, scale_ref, shift_ref, o_ref):
    # Pure 1-FMA stream: scale/shift were folded outside the kernel.
    x = x_ref[0].astype(jnp.float32)                    # (c_tile, hw_tile)
    o_ref[0] = (x * scale_ref[0] + shift_ref[0]).astype(o_ref.dtype)


# ---------------------------------------------------------------------------
# Wrapper
# ---------------------------------------------------------------------------
def conditional_batchnorm2d(x_nchw, y, embed0_w, embed1_w, *, eps=1e-4):
    """x_nchw: (N, C, H, W); y: (N,) int32 class ids; embed*_w: (num_classes, C)."""
    N, C, H, W = x_nchw.shape
    HW = H * W
    HW_pad = ((HW + _LANE - 1) // _LANE) * _LANE

    # Contiguous (free) reshape: C on sublanes, HW on lanes. No transposes.
    x3 = x_nchw.reshape(N, C, HW)
    if HW_pad != HW:
        # Lane-dense padding: keeps output stores unmasked; zeros do not affect
        # sum/sumsq and the padded tail is sliced off below.
        x3 = jnp.pad(x3, ((0, 0), (0, 0), (0, HW_pad - HW)))

    # Tiny embedding gathers stay in XLA.
    # TODO(synk): spectral_norm on the embedding weights is a training-time
    # reparameterization (power iteration); forward math here uses raw weights.
    gain = (1.0 + embed0_w[y]).astype(jnp.float32).reshape(N, C, 1)
    bias = embed1_w[y].astype(jnp.float32).reshape(N, C, 1)

    inv_count = 1.0 / float(N * HW)           # true element count (ignores pad)
    itemsize = x3.dtype.itemsize
    cost = pl.CostEstimate(
        flops=5 * N * C * HW,
        transcendentals=C,
        bytes_accessed=2 * N * C * HW_pad * itemsize,
    )

    def cparams(sem):
        return pltpu.CompilerParams(
            dimension_semantics=sem, vmem_limit_bytes=_VMEM_LIMIT_BYTES)

    c_cands = _divisor_tiles(C, _SUBLANE)

    # ---- Fused single-pass path (1 read + 1 write of x). ----
    fused_fit = [c for c in c_cands if N * c * HW_pad * 4 <= _FUSED_BLOCK_BYTES]
    if fused_fit:
        multi = [c for c in fused_fit if C // c >= 2]   # >=2 C blocks -> megacore
        c_tile = multi[0] if multi else fused_fit[0]

        x_spec = pl.BlockSpec((N, c_tile, HW_pad), lambda c: (0, c, 0))
        emb_spec = pl.BlockSpec((N, c_tile, 1), lambda c: (0, c, 0))

        out3 = pl.pallas_call(
            functools.partial(_fused_kernel, inv_count=inv_count, eps=eps),
            grid=(C // c_tile,),
            in_specs=[x_spec, emb_spec, emb_spec],
            out_specs=x_spec,
            out_shape=jax.ShapeDtypeStruct((N, C, HW_pad), x_nchw.dtype),
            compiler_params=cparams(("parallel",)),
            cost_estimate=cost,
        )(x3, gain, bias)
    else:
        # ---- Two-phase fallback (2 reads + 1 write of x). ----
        hw_cands = _divisor_tiles(HW_pad, _LANE)
        c_tile, hw_tile = c_cands[-1], hw_cands[-1]     # last resort: smallest tiles
        for hw_t in hw_cands:                           # prefer full HW: contiguous DMA
            fits = [c for c in c_cands if c * hw_t * itemsize <= _TWO_PHASE_BLOCK_BYTES]
            if fits:
                multi = [c for c in fits if C // c >= 2]
                c_tile, hw_tile = (multi[0] if multi else fits[0]), hw_t
                break

        grid = (C // c_tile, N, HW_pad // hw_tile)
        x_spec = pl.BlockSpec((1, c_tile, hw_tile), lambda c, n, h: (n, c, h))
        stat_spec = pl.BlockSpec((c_tile, 1), lambda c, n, h: (c, 0))
        emb_spec = pl.BlockSpec((1, c_tile, 1), lambda c, n, h: (n, c, 0))

        # Phase 1: per-channel sum / sumsq (single pass over x).
        ssum, ssq = pl.pallas_call(
            _stats_kernel,
            grid=grid,
            in_specs=[x_spec],
            out_specs=(stat_spec, stat_spec),
            out_shape=(
                jax.ShapeDtypeStruct((C, 1), jnp.float32),
                jax.ShapeDtypeStruct((C, 1), jnp.float32),
            ),
            compiler_params=cparams(("parallel", "arbitrary", "arbitrary")),
            cost_estimate=cost,
        )(x3)

        # Tiny O(N*C) epilogue in XLA: fold mean/var/rsqrt/gain/bias into
        # per-(n, c) scale/shift so phase 2 is a pure 1-FMA stream.
        mean = ssum * inv_count
        var = jnp.maximum(ssq * inv_count - mean * mean, 0.0)
        inv_std = jax.lax.rsqrt(var + eps)
        scale = inv_std[None, :, :] * gain              # (N, C, 1)
        shift = bias - mean[None, :, :] * scale         # (N, C, 1)

        # Phase 2: re-stream x, apply one FMA per element.
        out3 = pl.pallas_call(
            _norm_kernel,
            grid=grid,
            in_specs=[x_spec, emb_spec, emb_spec],
            out_specs=x_spec,
            out_shape=jax.ShapeDtypeStruct((N, C, HW_pad), x_nchw.dtype),
            compiler_params=cparams(("parallel", "parallel", "parallel")),
            cost_estimate=cost,
        )(x3, scale, shift)

    if HW_pad != HW:
        out3 = out3[:, :, :HW]
    return out3.reshape(N, C, H, W)


def _reference(x_nchw, y, embed0_w, embed1_w, eps=1e-4):
    # Pure-JAX reference mirroring the PyTorch forward.
    mean = jnp.mean(x_nchw, axis=(0, 2, 3), keepdims=True)
    var = jnp.mean((x_nchw - mean) ** 2, axis=(0, 2, 3), keepdims=True)
    x_hat = (x_nchw - mean) / jnp.sqrt(var + eps)
    gain = (1.0 + embed0_w[y])[:, :, None, None]
    bias = embed1_w[y][:, :, None, None]
    return x_hat * gain + bias


if __name__ == "__main__":
    # Small shapes consistent with the module: batch=2, channels=4, spatial=16.
    N, C, H, W = 2, 4, 16, 16
    num_classes = 8

    key = jax.random.PRNGKey(0)
    kx, ky, k0, k1 = jax.random.split(key, 4)

    x = jax.random.normal(kx, (N, C, H, W), dtype=jnp.float32)
    y = jax.random.randint(ky, (N,), 0, num_classes, dtype=jnp.int32)
    # nn.Embedding init: weights ~ N(0, 1). Deterministic synthetic init.
    embed0_w = jax.random.normal(k0, (num_classes, C), dtype=jnp.float32)
    embed1_w = jax.random.normal(k1, (num_classes, C), dtype=jnp.float32)

    out = conditional_batchnorm2d(x, y, embed0_w, embed1_w)
    out = jax.block_until_ready(out)

    ref = _reference(x, y, embed0_w, embed1_w)
    assert out.shape == (N, C, H, W)
    assert jnp.allclose(out, ref, atol=1e-4, rtol=1e-4), "mismatch vs reference"

    print("KERNEL_OK")
</pallas_src>

<mosaic_0001>
module attributes {stable_mosaic.version = 11 : i64} {
  func.func @_fused_kernel(%arg0: i32, %arg1: memref<2x4x256xf32, #tpu.memory_space<vmem>>, %arg2: memref<2x4x1xf32, #tpu.memory_space<vmem>>, %arg3: memref<2x4x1xf32, #tpu.memory_space<vmem>>, %arg4: memref<2x4x256xf32, #tpu.memory_space<vmem>>) attributes {dimension_semantics = [#tpu.dimension_semantics<parallel>], iteration_bounds = array<i64: 1>, scalar_prefetch = 0 : i64, scratch_operands = 0 : i64, tpu.core_type = #tpu.core_type<tc>, window_params = [{transform_indices = @transform_0, window_bounds = array<i64: 2, 4, 256>}, {transform_indices = @transform_1, window_bounds = array<i64: 2, 4, 1>}, {transform_indices = @transform_2, window_bounds = array<i64: 2, 4, 1>}, {transform_indices = @transform_3, window_bounds = array<i64: 2, 4, 256>}]} {
    %c0 = arith.constant 0 : index
    %c0_0 = arith.constant 0 : index
    %c0_1 = arith.constant 0 : index
    %0 = vector.load %arg1[%c0, %c0_0, %c0_1] : memref<2x4x256xf32, #tpu.memory_space<vmem>>, vector<2x4x256xf32>
    %cst = arith.constant dense<0.000000e+00> : vector<2x4xf32>
    %1 = vector.multi_reduction <add>, %0, %cst [2] : vector<2x4x256xf32> to vector<2x4xf32>
    %2 = vector.shape_cast %1 : vector<2x4xf32> to vector<2x4x1xf32>
    %cst_2 = arith.constant dense<0.000000e+00> : vector<4x1xf32>
    %3 = vector.multi_reduction <add>, %2, %cst_2 [0] : vector<2x4x1xf32> to vector<4x1xf32>
    %4 = vector.shape_cast %3 : vector<4x1xf32> to vector<1x4x1xf32>
    %5 = arith.mulf %0, %0 : vector<2x4x256xf32>
    %cst_3 = arith.constant dense<0.000000e+00> : vector<2x4xf32>
    %6 = vector.multi_reduction <add>, %5, %cst_3 [2] : vector<2x4x256xf32> to vector<2x4xf32>
    %7 = vector.shape_cast %6 : vector<2x4xf32> to vector<2x4x1xf32>
    %cst_4 = arith.constant dense<0.000000e+00> : vector<4x1xf32>
    %8 = vector.multi_reduction <add>, %7, %cst_4 [0] : vector<2x4x1xf32> to vector<4x1xf32>
    %9 = vector.shape_cast %8 : vector<4x1xf32> to vector<1x4x1xf32>
    %cst_5 = arith.constant 0.001953125 : f32
    %10 = vector.broadcast %cst_5 : f32 to vector<1x4x1xf32>
    %11 = arith.mulf %4, %10 : vector<1x4x1xf32>
    %cst_6 = arith.constant 0.001953125 : f32
    %12 = vector.broadcast %cst_6 : f32 to vector<1x4x1xf32>
    %13 = arith.mulf %9, %12 : vector<1x4x1xf32>
    %14 = arith.mulf %11, %11 : vector<1x4x1xf32>
    %15 = arith.subf %13, %14 : vector<1x4x1xf32>
    %cst_7 = arith.constant 0.000000e+00 : f32
    %16 = vector.broadcast %cst_7 : f32 to vector<1x4x1xf32>
    %17 = arith.maximumf %15, %16 : vector<1x4x1xf32>
    %cst_8 = arith.constant 9.99999974E-5 : f32
    %18 = vector.broadcast %cst_8 : f32 to vector<1x4x1xf32>
    %19 = arith.addf %17, %18 : vector<1x4x1xf32>
    %20 = math.rsqrt %19 : vector<1x4x1xf32>
    %c0_9 = arith.constant 0 : index
    %c0_10 = arith.constant 0 : index
    %c0_11 = arith.constant 0 : index
    %21 = vector.load %arg2[%c0_9, %c0_10, %c0_11] : memref<2x4x1xf32, #tpu.memory_space<vmem>>, vector<2x4x1xf32>
    %22 = vector.broadcast %20 : vector<1x4x1xf32> to vector<2x4x1xf32>
    %23 = arith.mulf %22, %21 : vector<2x4x1xf32>
    %c0_12 = arith.constant 0 : index
    %c0_13 = arith.constant 0 : index
    %c0_14 = arith.constant 0 : index
    %24 = vector.load %arg3[%c0_12, %c0_13, %c0_14] : memref<2x4x1xf32, #tpu.memory_space<vmem>>, vector<2x4x1xf32>
    %25 = vector.broadcast %11 : vector<1x4x1xf32> to vector<2x4x1xf32>
    %26 = arith.mulf %25, %23 : vector<2x4x1xf32>
    %27 = arith.subf %24, %26 : vector<2x4x1xf32>
    %28 = vector.broadcast %23 : vector<2x4x1xf32> to vector<2x4x256xf32>
    %29 = arith.mulf %0, %28 : vector<2x4x256xf32>
    %30 = vector.broadcast %27 : vector<2x4x1xf32> to vector<2x4x256xf32>
    %31 = arith.addf %29, %30 : vector<2x4x256xf32>
    %c0_15 = arith.constant 0 : index
    %c0_16 = arith.constant 0 : index
    %c0_17 = arith.constant 0 : index
    %32 = vector.load %arg4[%c0_15, %c0_16, %c0_17] : memref<2x4x256xf32, #tpu.memory_space<vmem>>, vector<2x4x256xf32>
    tpu.vector_store %arg4[%c0_15, %c0_16, %c0_17], %31 {strides = array<i32>} : memref<2x4x256xf32, #tpu.memory_space<vmem>>, vector<2x4x256xf32>,
    return
  }
  func.func @transform_0(%arg0: i32) -> (i32, i32, i32) {
    %c0_i32 = arith.constant 0 : i32
    %c0_i32_0 = arith.constant 0 : i32
    %c0_i32_1 = arith.constant 0 : i32
    return %c0_i32, %arg0, %c0_i32_0 : i32, i32, i32
  }
  func.func @transform_1(%arg0: i32) -> (i32, i32, i32) {
    %c0_i32 = arith.constant 0 : i32
    %c0_i32_0 = arith.constant 0 : i32
    %c0_i32_1 = arith.constant 0 : i32
    return %c0_i32, %arg0, %c0_i32_0 : i32, i32, i32
  }
  func.func @transform_2(%arg0: i32) -> (i32, i32, i32) {
    %c0_i32 = arith.constant 0 : i32
    %c0_i32_0 = arith.constant 0 : i32
    %c0_i32_1 = arith.constant 0 : i32
    return %c0_i32, %arg0, %c0_i32_0 : i32, i32, i32
  }
  func.func @transform_3(%arg0: i32) -> (i32, i32, i32) {
    %c0_i32 = arith.constant 0 : i32
    %c0_i32_0 = arith.constant 0 : i32
    %c0_i32_1 = arith.constant 0 : i32
    return %c0_i32, %arg0, %c0_i32_0 : i32, i32, i32
  }
}

</mosaic_0001>

<llo_original>
// kernel: tpu_custom_call.1
$region0: #{tpu_custom_call.1}
  #allocation0 [shape = 'u32[]', space=smem, size = 0x4, offset = 0x4, fixed_abs, tag = 'smem constant byte address 0x4 - core index']
  #allocation1 [shape = 'u32[72,128]{1,0:T(1,128)}', space=vmem, size = 0x9000, scoped, tag = 'internal scratch']
  %s0 = inlined_call_operand.vmem [shape: f32[2,4,256], index: 0, kind: input, shape index: {}]
  %s1 = inlined_call_operand.vmem [shape: f32[2,4,1], index: 1, kind: input, shape index: {}]
  %s2 = inlined_call_operand.vmem [shape: f32[2,4,1], index: 2, kind: input, shape index: {}]
  %s3 = inlined_call_operand.hbm [shape: f32[2,4,256], index: 3, kind: output, shape index: {}]
  %s4 = sld [smem:[#allocation0]]
  $region22: #{tpu_custom_call.1} parent=0
    _
  %s6 = ssub.s32 1, %s4
  %s7 = scalar_select 0, %s6, %s4
  $region1: #{tpu_custom_call.1} parent=0
    #allocation2 [shape = 'u8[8192]{0}', space=vmem, size = 0x2000, scoped, tag = 'output window, operand 0, single buffered']
    #allocation3 [shape = 's32[1]{0}', space=sflag, size = 0x4, scoped, tag = 'scoped memory for tpu_custom_call.1']
    %8 = vsyncpa [#allocation3], 0
    // Predicated region
    $region2: #{tpu_custom_call.1} parent=1 // pred_check
      _
    $region3: #{tpu_custom_call.1} parent=1 // pred_check_branch
      %10 = sbr.rel (0) target = $region5
    $region4: #{tpu_custom_call.1} parent=1 // pred_region
      _
    $region5: #{tpu_custom_call.1} parent=1 // pred_fallthru
      _
    // Predicated region
    $region6: #{tpu_custom_call.1} parent=1 // pred_check
      _
    $region7: #{tpu_custom_call.1} parent=1 // pred_check_branch
      %12 = sbr.rel (0) target = $region9
    $region8: #{tpu_custom_call.1} parent=1 // pred_region
      _
    $region9: #{tpu_custom_call.1} parent=1 // pred_fallthru
      _
    // Predicated region
    $region10: #{tpu_custom_call.1} parent=1 // pred_check
      _
    $region11: #{tpu_custom_call.1} parent=1 // pred_check_branch
      %14 = sbr.rel (0) target = $region13
    $region12: #{tpu_custom_call.1} parent=1 // pred_region
      _
    $region13: #{tpu_custom_call.1} parent=1 // pred_fallthru
      _
    %v15 = vld [vmem:[%s0] sm:$0xff]
    %v16 = vld [vmem:[%s0 + $0x8] sm:$0xff]
    %19 = vst [vmem:[#allocation1] ss:$2 sm:$0xff] %v15
    %v20 = vld.sshfl [vmem:[#allocation1] sm:$0xff pattern:$0x75316420]
    %v21 = vld.sshfl [vmem:[#allocation1 + $0x8] sm:$0xff pattern:$0x75316420]
    %s22 = scalar_lea.vmem [#allocation1], 16
    %23 = vst [vmem:[%s22] ss:$2 sm:$0xff] %v16
    %v24 = vld.sshfl [vmem:[#allocation1 + $0x10] sm:$0xff pattern:$0x75316420]
    %v25 = vld.sshfl [vmem:[#allocation1 + $0x18] sm:$0xff pattern:$0x75316420]
    %vm30 = vcmask 1043456
    %v31 = vsel %vm30, %v20, 0.0
    %v32 = vsel %vm30, %v21, 0.0
    %v33 = vadd.f32 %v31, %v32
    %34 = vadd.xlane.f32.xlu0 %v33
    %v35 = vpop.xlane.xlu0 %34
    %v36 = vsel %vm30, %v24, 0.0
    %v37 = vsel %vm30, %v25, 0.0
    %v38 = vadd.f32 %v36, %v37
    %39 = vadd.xlane.f32.xlu0 %v38
    %v40 = vpop.xlane.xlu0 %39
    %v41 = vsel %vm30, %v35, 0.0
    %v42 = vsel %vm30, %v40, 0.0
    %v43 = vadd.f32 %v41, %v42
    %v44 = vmul.f32 %v15, %v15
    %v45 = vmul.f32 %v16, %v16
    %48 = vst [vmem:[#allocation1] ss:$2 sm:$0xff] %v44
    %v49 = vld.sshfl [vmem:[#allocation1] sm:$0xff pattern:$0x75316420]
    %v50 = vld.sshfl [vmem:[#allocation1 + $0x8] sm:$0xff pattern:$0x75316420]
    %s51 = scalar_lea.vmem [#allocation1], 16
    %52 = vst [vmem:[%s51] ss:$2 sm:$0xff] %v45
    %v53 = vld.sshfl [vmem:[#allocation1 + $0x10] sm:$0xff pattern:$0x75316420]
    %v54 = vld.sshfl [vmem:[#allocation1 + $0x18] sm:$0xff pattern:$0x75316420]
    %v59 = vsel %vm30, %v49, 0.0
    %v60 = vsel %vm30, %v50, 0.0
    %v61 = vadd.f32 %v59, %v60
    %62 = vadd.xlane.f32.xlu0 %v61
    %v63 = vpop.xlane.xlu0 %62
    %v64 = vsel %vm30, %v53, 0.0
    %v65 = vsel %vm30, %v54, 0.0
    %v66 = vadd.f32 %v64, %v65
    %67 = vadd.xlane.f32.xlu0 %v66
    %v68 = vpop.xlane.xlu0 %67
    %v69 = vsel %vm30, %v63, 0.0
    %v70 = vsel %vm30, %v68, 0.0
    %v71 = vadd.f32 %v69, %v70
    %v72 = vmul.f32 %v43, 0.001953125
    %v73 = vmul.f32 %v71, 0.001953125
    %v74 = vmul.f32 %v72, %v72
    %v75 = vsub.f32 %v73, %v74
    %v76 = vmax.f32 %v75, 0.0
    %v77 = vadd.f32 %v76, 0.0001
    %v78 = vrsqrt.pop %v77
    %v79 = vmul.f32 %v78, %v77
    %v80 = vmul.f32 %v79, %v78
    %v81 = vmul.f32 0.5, %v80
    %v82 = vsub.f32 1.5, %v81
    %v83 = vmul.f32 %v78, %v82
    %vm84 = vweird.f32 %v77
    %vm85 = vweird.f32 %v78
    %vm86 = vmor %vm84, %vm85
    %v87 = vsel %vm86, %v78, %v83
    %v88 = vld [vmem:[%s1] sm:$0xf]
    %v89 = vld [vmem:[%s1 + $0x4] sm:$0xf]
    %v90 = vmul.f32 %v87, %v88
    %v91 = vmul.f32 %v87, %v89
    %v92 = vld [vmem:[%s2] sm:$0xf]
    %v93 = vld [vmem:[%s2 + $0x4] sm:$0xf]
    %v94 = vmul.f32 %v72, %v90
    %v95 = vmul.f32 %v72, %v91
    %v96 = vsub.f32 %v92, %v94
    %v97 = vsub.f32 %v93, %v95
    %99 = vset.pattern.permute.xlu0 0
    %100 = vperm.xlu0 %99, %v90
    %v101 = vpop.permute.xlu0 %100
    %103 = vset.pattern.permute.xlu0 0
    %104 = vperm.xlu0 %103, %v91
    %v105 = vpop.permute.xlu0 %104
    %v107 = vunpack.c.l.s4 839922192
    %v108 = vunpack.c.0.s8 %v107
    %v109 = vperm.slane %v101, %v108
    %v111 = vunpack.c.l.s4 839922192
    %v112 = vunpack.c.0.s8 %v111
    %v113 = vperm.slane %v105, %v112
    %v116 = vmul.f32 %v15, %v109
    %v117 = vmul.f32 %v16, %v113
    %119 = vset.pattern.permute.xlu0 0
    %120 = vperm.xlu0 %119, %v96
    %v121 = vpop.permute.xlu0 %120
    %123 = vset.pattern.permute.xlu0 0
    %124 = vperm.xlu0 %123, %v97
    %v125 = vpop.permute.xlu0 %124
    %v127 = vunpack.c.l.s4 839922192
    %v128 = vunpack.c.0.s8 %v127
    %v129 = vperm.slane %v121, %v128
    %v131 = vunpack.c.l.s4 839922192
    %v132 = vunpack.c.0.s8 %v131
    %v133 = vperm.slane %v125, %v132
    %v136 = vadd.f32 %v116, %v129
    %v137 = vadd.f32 %v117, %v133
    %138 = vst [vmem:[#allocation2] sm:$0xff] %v136
    %139 = vst [vmem:[#allocation2 + $0x8] sm:$0xff] %v137
    // Predicated region
    $region14: #{tpu_custom_call.1} parent=1 // pred_check
      _
    $region15: #{tpu_custom_call.1} parent=1 // pred_check_branch
      %141 = sbr.rel (0) target = $region17
    $region16: #{tpu_custom_call.1} parent=1 // pred_region
      %143 = vsyncadd [#allocation3], 0
      %s144 = sshll.u32 [#allocation2], 4
      %s145 = int_to_ptr.vmem [resolvable:$true] %s144
      %s146 = sshll.u32 %s3, 4
      %s147 = int_to_ptr.hbm [resolvable:$true] %s146
      %152 = dma.vmem_to_hbm [thread:$0]  %s145, 256, %s147, [#allocation3], 128, 128, 8
    $region17: #{tpu_custom_call.1} parent=1 // pred_fallthru
      _
    // Predicated region
    $region18: #{tpu_custom_call.1} parent=1 // pred_check
      _
    $region19: #{tpu_custom_call.1} parent=1 // pred_check_branch
      %154 = sbr.rel (0) target = $region21
    $region20: #{tpu_custom_call.1} parent=1 // pred_region
      %156 = dma.done [#allocation3], 256
    $region21: #{tpu_custom_call.1} parent=1 // pred_fallthru
      _
    %157 = vsyncpa [#allocation3], 1

</llo_original>
